<compile_context>
chip_gen: v5e
topology: v5e:2x2
jax: 0.10.0
libtpu: 0.0.40
codegen_flags: <defaults>
</compile_context>

<pallas_src>
import functools
import math

import jax
import jax.numpy as jnp
from jax import lax
from jax.experimental import pallas as pl
from jax.experimental.pallas import tpu as pltpu


# --------------------------------------------------------------------------- #
# Kernels
# --------------------------------------------------------------------------- #
def _attn_small_kernel(q_ref, k_ref, v_ref, mask_ref, o_ref):
    """Single-shot batched attention for tiny problems (everything in VMEM)."""
    q = q_ref[...]                      # (B, Lq, D)
    k = k_ref[...]                      # (B, Lk, D)
    v = v_ref[...]                      # (B, Lk, Dv)

    scale = 1.0 / math.sqrt(q.shape[-1])
    s = jnp.einsum("bqd,bkd->bqk",
                   q.astype(jnp.float32) * scale, k.astype(jnp.float32),
                   preferred_element_type=jnp.float32)           # (B, Lq, Lk)
    # PyTorch semantics: bool mask promoted to {0,1} float and ADDED.
    s = s + mask_ref[...].astype(jnp.float32)

    m = jnp.max(s, axis=-1, keepdims=True)
    p = jnp.exp(s - m)
    l = jnp.sum(p, axis=-1, keepdims=True)
    w = p * pl.reciprocal(l, approx=True)                        # EUP, not VALU div

    o_ref[...] = jnp.einsum("bqk,bkv->bqv", w.astype(v.dtype), v,
                            preferred_element_type=jnp.float32).astype(o_ref.dtype)


def _flash_attn_kernel(q_ref, k_ref, v_ref, mask_ref, o_ref,
                       m_sc, l_sc, acc_sc, *, mask_resident, matmul_dtype):
    """Flash-style tile: grid = (Lq//tq, B, Lk//tk); Lk is the reduction axis."""
    j = pl.program_id(2)

    @pl.when(j == 0)
    def _():
        m_sc[...] = jnp.full_like(m_sc, -jnp.inf)
        l_sc[...] = jnp.zeros_like(l_sc)
        acc_sc[...] = jnp.zeros_like(acc_sc)

    q = q_ref[0]                        # (tq, D)
    k = k_ref[0]                        # (tk, D)
    v = v_ref[0]                        # (tk, Dv)

    scale = 1.0 / math.sqrt(q.shape[-1])
    # Fold the scale into q (tq*D mults, not tq*tk); contract on D (no k.T copy).
    q_s = (q.astype(jnp.float32) * scale).astype(matmul_dtype)
    s = lax.dot_general(q_s, k.astype(matmul_dtype), (((1,), (1,)), ((), ())),
                        preferred_element_type=jnp.float32)      # (tq, tk)

    if mask_resident:
        # Batch-invariant mask kept VMEM-resident as (Lk//tk, tq, tk);
        # dynamic index on the leading dim picks the current Lk tile.
        m_tile = mask_ref[j]                                     # (tq, tk) int8
    else:
        m_tile = mask_ref[...]                                   # (tq, tk) int8
    s = s + m_tile.astype(jnp.float32)

    m_prev = m_sc[...]                                            # (tq, 1)
    m_new = jnp.maximum(m_prev, jnp.max(s, axis=-1, keepdims=True))
    alpha = jnp.exp(m_prev - m_new)
    p = jnp.exp(s - m_new)                                        # (tq, tk)

    l_sc[...] = alpha * l_sc[...] + jnp.sum(p, axis=-1, keepdims=True)
    acc_sc[...] = alpha * acc_sc[...] + lax.dot_general(
        p.astype(matmul_dtype), v.astype(matmul_dtype),
        (((1,), (0,)), ((), ())), preferred_element_type=jnp.float32)
    m_sc[...] = m_new

    @pl.when(j == pl.num_programs(2) - 1)
    def _():
        inv_l = pl.reciprocal(l_sc[...], approx=True)
        o_ref[0] = (acc_sc[...] * inv_l).astype(o_ref.dtype)


# --------------------------------------------------------------------------- #
# Wrapper
# --------------------------------------------------------------------------- #
def _pick_tile(dim, target, align):
    """Largest tile <= target that divides dim and is a multiple of `align`;
    falls back to the full dimension (always a legal block)."""
    if dim <= target:
        return dim
    t = max(align, (target // align) * align)
    while t >= align:
        if dim % t == 0:
            return t
        t //= 2
    return dim


def _vmem_limit_bytes():
    """Per-generation VMEM budget: physical capacity minus headroom, capped."""
    cap = 64 * 1024 * 1024               # v7x worst case if query fails
    try:
        info = pltpu.get_tpu_info()
        cap = int(getattr(info, "vmem_capacity_bytes", cap) or cap)
    except Exception:
        pass
    # 16 MiB headroom for compiler-internal scratch; cap at 100 MiB (v5e/v6e).
    return int(min(cap - 16 * 1024 * 1024, 100 * 1024 * 1024))


def attention(query, key, value, attn_mask, *, block_q=512, block_k=1024,
              matmul_dtype=None):
    B, Lq, D = query.shape
    _, Lk, Dv = value.shape
    out_dtype = query.dtype

    # Optional reduced-precision matmul path (halves q/k/v HBM bytes too).
    if matmul_dtype is not None:
        md = jnp.dtype(matmul_dtype)
        if md != query.dtype:
            query = query.astype(md)
            key = key.astype(md)
            value = value.astype(md)
    compute_dtype = query.dtype

    # Mask shipped narrow (int8 {0,1}, exact for bool); cast to f32 in kernel.
    # TODO(synk): a general float mask would lose precision here; bool assumed.
    mask = attn_mask.astype(jnp.int8)
    vmem_limit = _vmem_limit_bytes()

    # Tiny problems (the torch snippet's scale): one invocation, no grid overhead.
    if Lq * Lk <= 128 * 128 and B * Lq * Lk <= (1 << 20):
        return pl.pallas_call(
            _attn_small_kernel,
            out_shape=jax.ShapeDtypeStruct((B, Lq, Dv), out_dtype),
            compiler_params=pltpu.CompilerParams(vmem_limit_bytes=vmem_limit),
        )(query, key, value, mask)

    tq = _pick_tile(Lq, block_q, 32)     # 32-row alignment: safe sublanes for int8 mask
    tk = _pick_tile(Lk, block_k, 128)    # last dims need %128 (or full)

    in_bytes = query.dtype.itemsize

    def footprint(tq_, tk_, resident_):
        mask_b = tq_ * Lk if resident_ else tq_ * tk_
        io = 2 * ((tq_ * D + tk_ * D + tk_ * Dv + tq_ * Dv) * in_bytes + mask_b)
        scratch = tq_ * (2 + Dv) * 4
        temps = 2 * tq_ * tk_ * 4         # s / p f32 intermediates
        return io + scratch + temps

    def resident_ok(tq_):
        return 2 * tq_ * Lk <= 8 * 1024 * 1024

    mask_resident = resident_ok(tq)
    budget = int(0.75 * vmem_limit)
    for _ in range(32):                   # shrink tiles until the footprint fits
        if footprint(tq, tk, mask_resident) <= budget:
            break
        if mask_resident and footprint(tq, tk, False) <= budget:
            mask_resident = False
            continue
        if tk > 128:
            new_tk = _pick_tile(Lk, tk // 2, 128)
            if new_tk < tk:
                tk = new_tk
                mask_resident = mask_resident and resident_ok(tq)
                continue
        if tq > 32:
            new_tq = _pick_tile(Lq, tq // 2, 32)
            if new_tq < tq:
                tq = new_tq
                mask_resident = mask_resident and resident_ok(tq)
                continue
        break

    n_i, n_j = Lq // tq, Lk // tk
    grid = (n_i, B, n_j)                  # mask index is b-invariant -> no re-fetch per b

    if mask_resident:
        # (Lq, Lk) -> (Lk//tk, Lq, tk): one-time tiny XLA reshape/transpose so the
        # whole Lk row of the mask stays VMEM-resident across b and j.
        mask_in = mask.reshape(Lq, n_j, tk).transpose(1, 0, 2)
        mask_spec = pl.BlockSpec((n_j, tq, tk), lambda i, b, j: (0, i, 0))
    else:
        mask_in = mask
        mask_spec = pl.BlockSpec((tq, tk), lambda i, b, j: (i, j))

    kernel = functools.partial(_flash_attn_kernel,
                               mask_resident=mask_resident,
                               matmul_dtype=compute_dtype)

    return pl.pallas_call(
        kernel,
        out_shape=jax.ShapeDtypeStruct((B, Lq, Dv), out_dtype),
        grid_spec=pltpu.PrefetchScalarGridSpec(
            num_scalar_prefetch=0,
            grid=grid,
            in_specs=[
                pl.BlockSpec((1, tq, D), lambda i, b, j: (b, i, 0)),
                pl.BlockSpec((1, tk, D), lambda i, b, j: (b, j, 0)),
                pl.BlockSpec((1, tk, Dv), lambda i, b, j: (b, j, 0)),
                mask_spec,
            ],
            out_specs=pl.BlockSpec((1, tq, Dv), lambda i, b, j: (b, i, 0)),
            scratch_shapes=[
                pltpu.VMEM((tq, 1), jnp.float32),    # running max
                pltpu.VMEM((tq, 1), jnp.float32),    # running denom
                pltpu.VMEM((tq, Dv), jnp.float32),   # output accumulator
            ],
        ),
        compiler_params=pltpu.CompilerParams(
            dimension_semantics=("parallel", "parallel", "arbitrary"),
            vmem_limit_bytes=vmem_limit,
        ),
    )(query, key, value, mask_in)


# --------------------------------------------------------------------------- #
# Demo / correctness check
# --------------------------------------------------------------------------- #
if __name__ == "__main__":

    def reference(query, key_t, value, attn_mask):
        d = query.shape[-1]
        qk = jnp.einsum("bqd,bkd->bqk", query, key_t) / math.sqrt(d)
        qk = qk + attn_mask.astype(jnp.float32)
        return jnp.einsum("bqk,bkv->bqv", jax.nn.softmax(qk, axis=-1), value)

    def run_case(B, Lq, Lk, D, Dv, rng, *, block_q=512, block_k=1024,
                 matmul_dtype=None, atol=2e-3, rtol=2e-3):
        kq, kk, kv = jax.random.split(rng, 3)
        query = jax.random.uniform(kq, (B, Lq, D), dtype=jnp.float32)
        key_t = jax.random.uniform(kk, (B, Lk, D), dtype=jnp.float32)
        value = jax.random.uniform(kv, (B, Lk, Dv), dtype=jnp.float32)
        attn_mask = jnp.triu(jnp.ones((Lq, Lk), dtype=jnp.float32), 1).astype(bool)

        out = attention(query, key_t, value, attn_mask,
                        block_q=block_q, block_k=block_k,
                        matmul_dtype=matmul_dtype)
        out = jax.block_until_ready(out)

        ref = reference(query, key_t, value, attn_mask)
        assert out.shape == ref.shape
        assert jnp.allclose(out, ref, atol=atol, rtol=rtol), (
            f"mismatch vs reference for B={B}, Lq={Lq}, Lk={Lk}, "
            f"matmul_dtype={matmul_dtype}")

    rng1, rng2, rng3 = jax.random.split(jax.random.PRNGKey(0), 3)

    # Tiny path: single invocation (scale of the original torch snippet's shapes).
    run_case(B=4, Lq=8, Lk=8, D=16, Dv=16, rng=rng1)

    # Flash path: grid = (2, 2, 2), resident int8 mask, lane-dense (Dv=128) output.
    run_case(B=2, Lq=512, Lk=512, D=64, Dv=128,
             block_q=256, block_k=256, rng=rng2)

    # Flash path with bf16 MXU operands (f32 accumulation), looser tolerance.
    run_case(B=2, Lq=512, Lk=512, D=64, Dv=128,
             block_q=256, block_k=256, rng=rng3,
             matmul_dtype=jnp.bfloat16, atol=5e-2, rtol=5e-2)

    print("KERNEL_OK")
</pallas_src>

<mosaic_0001>
module attributes {stable_mosaic.version = 11 : i64} {
  func.func @_attn_small_kernel(%arg0: memref<4x8x16xf32, #tpu.memory_space<vmem>>, %arg1: memref<4x8x16xf32, #tpu.memory_space<vmem>>, %arg2: memref<4x8x16xf32, #tpu.memory_space<vmem>>, %arg3: memref<8x8xi8, #tpu.memory_space<vmem>>, %arg4: memref<4x8x16xf32, #tpu.memory_space<vmem>>) attributes {dimension_semantics = [], scalar_prefetch = 0 : i64, scratch_operands = 0 : i64, tpu.core_type = #tpu.core_type<tc>} {
    %c0 = arith.constant 0 : index
    %c0_0 = arith.constant 0 : index
    %c0_1 = arith.constant 0 : index
    %0 = vector.load %arg0[%c0, %c0_0, %c0_1] : memref<4x8x16xf32, #tpu.memory_space<vmem>>, vector<4x8x16xf32>
    %c0_2 = arith.constant 0 : index
    %c0_3 = arith.constant 0 : index
    %c0_4 = arith.constant 0 : index
    %1 = vector.load %arg1[%c0_2, %c0_3, %c0_4] : memref<4x8x16xf32, #tpu.memory_space<vmem>>, vector<4x8x16xf32>
    %c0_5 = arith.constant 0 : index
    %c0_6 = arith.constant 0 : index
    %c0_7 = arith.constant 0 : index
    %2 = vector.load %arg2[%c0_5, %c0_6, %c0_7] : memref<4x8x16xf32, #tpu.memory_space<vmem>>, vector<4x8x16xf32>
    %cst = arith.constant 2.500000e-01 : f32
    %3 = vector.broadcast %cst : f32 to vector<4x8x16xf32>
    %4 = arith.mulf %0, %3 : vector<4x8x16xf32>
    "tpu.trace_start"() <{level = 10 : i32, message = "bqd,bkd->bqk"}> : () -> ()
    %cst_8 = arith.constant dense<0.000000e+00> : vector<4x8x8xf32>
    %5 = tpu.matmul %4, %1, %cst_8 {dimension_numbers = #tpu.dot_dimension_numbers<[2], [2], [1], [1], [0, 0, 0, 1, 1, 1], [0], [0]>} : vector<4x8x16xf32>, vector<4x8x16xf32>, vector<4x8x8xf32> -> vector<4x8x8xf32>
    "tpu.trace_stop"() : () -> ()
    %c0_9 = arith.constant 0 : index
    %c0_10 = arith.constant 0 : index
    %6 = vector.load %arg3[%c0_9, %c0_10] : memref<8x8xi8, #tpu.memory_space<vmem>>, vector<8x8xi8>
    %7 = arith.sitofp %6 : vector<8x8xi8> to vector<8x8xf32>
    %8 = vector.shape_cast %7 : vector<8x8xf32> to vector<1x8x8xf32>
    %9 = vector.broadcast %8 : vector<1x8x8xf32> to vector<4x8x8xf32>
    %10 = arith.addf %5, %9 : vector<4x8x8xf32>
    %cst_11 = arith.constant dense<0xFF800000> : vector<4x8xf32>
    %11 = vector.multi_reduction <maximumf>, %10, %cst_11 [2] : vector<4x8x8xf32> to vector<4x8xf32>
    %12 = vector.shape_cast %11 : vector<4x8xf32> to vector<4x8x1xf32>
    %13 = vector.broadcast %12 : vector<4x8x1xf32> to vector<4x8x8xf32>
    %14 = arith.subf %10, %13 : vector<4x8x8xf32>
    %15 = math.exp %14 : vector<4x8x8xf32>
    %cst_12 = arith.constant dense<0.000000e+00> : vector<4x8xf32>
    %16 = vector.multi_reduction <add>, %15, %cst_12 [2] : vector<4x8x8xf32> to vector<4x8xf32>
    %17 = vector.shape_cast %16 : vector<4x8xf32> to vector<4x8x1xf32>
    %18 = tpu.reciprocal %17 {approx = true} : vector<4x8x1xf32> -> vector<4x8x1xf32>
    %19 = vector.broadcast %18 : vector<4x8x1xf32> to vector<4x8x8xf32>
    %20 = arith.mulf %15, %19 : vector<4x8x8xf32>
    "tpu.trace_start"() <{level = 10 : i32, message = "bqk,bkv->bqv"}> : () -> ()
    %cst_13 = arith.constant dense<0.000000e+00> : vector<4x8x16xf32>
    %21 = tpu.matmul %20, %2, %cst_13 {dimension_numbers = #tpu.dot_dimension_numbers<[2], [1], [1], [2], [0, 0, 0, 1, 1, 2], [0], [0]>} : vector<4x8x8xf32>, vector<4x8x16xf32>, vector<4x8x16xf32> -> vector<4x8x16xf32>
    "tpu.trace_stop"() : () -> ()
    %c0_14 = arith.constant 0 : index
    %c0_15 = arith.constant 0 : index
    %c0_16 = arith.constant 0 : index
    %22 = vector.load %arg4[%c0_14, %c0_15, %c0_16] : memref<4x8x16xf32, #tpu.memory_space<vmem>>, vector<4x8x16xf32>
    tpu.vector_store %arg4[%c0_14, %c0_15, %c0_16], %21 {strides = array<i32>} : memref<4x8x16xf32, #tpu.memory_space<vmem>>, vector<4x8x16xf32>,
    return
  }
}

</mosaic_0001>

<llo_original>
// kernel: tpu_custom_call.1
$region0: #{tpu_custom_call.1}
  #allocation0 [shape = 'u32[]', space=smem, size = 0x4, offset = 0x4, fixed_abs, tag = 'smem constant byte address 0x4 - core index']
  #allocation1 [shape = 'u32[72,128]{1,0:T(1,128)}', space=vmem, size = 0x9000, scoped, tag = 'internal scratch']
  %s0 = inlined_call_operand.hbm [shape: f32[4,8,16], index: 0, kind: input, shape index: {}]
  %s1 = inlined_call_operand.hbm [shape: f32[4,8,16], index: 1, kind: input, shape index: {}]
  %s2 = inlined_call_operand.hbm [shape: f32[4,8,16], index: 2, kind: input, shape index: {}]
  %s3 = inlined_call_operand.vmem [shape: s8[8,8], index: 3, kind: input, shape index: {}]
  %s4 = inlined_call_operand.hbm [shape: f32[4,8,16], index: 4, kind: output, shape index: {}]
  %s5 = sld [smem:[#allocation0]]
  $region38: #{tpu_custom_call.1} parent=0
    _
  %s7 = ssub.s32 1, %s5
  %s8 = scalar_select 0, %s7, %s5
  $region1: #{tpu_custom_call.1} parent=0
    #allocation2 [shape = 'u8[16384]{0}', space=vmem, size = 0x4000, scoped, tag = 'input window, operand 0, single buffered']
    #allocation3 [shape = 's32[1]{0}', space=sflag, size = 0x4, scoped, tag = 'scoped memory for tpu_custom_call.1']
    #allocation4 [shape = 's32[1]{0}', space=sflag, size = 0x4, scoped, tag = 'scoped memory for tpu_custom_call.1']
    #allocation5 [shape = 'u8[16384]{0}', space=vmem, size = 0x4000, scoped, tag = 'input window, operand 1, single buffered']
    #allocation6 [shape = 's32[1]{0}', space=sflag, size = 0x4, scoped, tag = 'scoped memory for tpu_custom_call.1']
    #allocation7 [shape = 'u8[16384]{0}', space=vmem, size = 0x4000, scoped, tag = 'input window, operand 2, single buffered']
    #allocation8 [shape = 'u8[16384]{0}', space=vmem, size = 0x4000, scoped, tag = 'output window, operand 0, single buffered']
    %9 = vsyncpa [#allocation3], 0
    %10 = vsyncpa [#allocation6], 0
    %11 = vsyncpa [#allocation4], 0
    // Predicated region
    $region2: #{tpu_custom_call.1} parent=1 // pred_check
      _
    $region3: #{tpu_custom_call.1} parent=1 // pred_check_branch
      %13 = sbr.rel (0) target = $region5
    $region4: #{tpu_custom_call.1} parent=1 // pred_region
      %15 = vsyncadd [#allocation3], 0
      %s16 = sshll.u32 %s0, 4
      %s17 = int_to_ptr.hbm [resolvable:$true] %s16
      %s18 = sshll.u32 [#allocation2], 4
      %s19 = int_to_ptr.vmem [resolvable:$true] %s18
      %24 = dma.hbm_to_vmem [thread:$0]  %s17, 512, %s19, [#allocation3], 128, 128, 8
    $region5: #{tpu_custom_call.1} parent=1 // pred_fallthru
      _
    // Predicated region
    $region6: #{tpu_custom_call.1} parent=1 // pred_check
      _
    $region7: #{tpu_custom_call.1} parent=1 // pred_check_branch
      %26 = sbr.rel (0) target = $region9
    $region8: #{tpu_custom_call.1} parent=1 // pred_region
      %28 = vsyncadd [#allocation6], 0
      %s29 = sshll.u32 %s1, 4
      %s30 = int_to_ptr.hbm [resolvable:$true] %s29
      %s31 = sshll.u32 [#allocation5], 4
      %s32 = int_to_ptr.vmem [resolvable:$true] %s31
      %37 = dma.hbm_to_vmem [thread:$0]  %s30, 512, %s32, [#allocation6], 128, 128, 8
    $region9: #{tpu_custom_call.1} parent=1 // pred_fallthru
      _
    // Predicated region
    $region10: #{tpu_custom_call.1} parent=1 // pred_check
      _
    $region11: #{tpu_custom_call.1} parent=1 // pred_check_branch
      %39 = sbr.rel (0) target = $region13
    $region12: #{tpu_custom_call.1} parent=1 // pred_region
      %41 = vsyncadd [#allocation6], 0
      %s42 = sshll.u32 %s2, 4
      %s43 = int_to_ptr.hbm [resolvable:$true] %s42
      %s44 = sshll.u32 [#allocation7], 4
      %s45 = int_to_ptr.vmem [resolvable:$true] %s44
      %50 = dma.hbm_to_vmem [thread:$0]  %s43, 512, %s45, [#allocation6], 128, 128, 8
    $region13: #{tpu_custom_call.1} parent=1 // pred_fallthru
      _
    // Predicated region
    $region14: #{tpu_custom_call.1} parent=1 // pred_check
      _
    $region15: #{tpu_custom_call.1} parent=1 // pred_check_branch
      %52 = sbr.rel (0) target = $region17
    $region16: #{tpu_custom_call.1} parent=1 // pred_region
      _
    $region17: #{tpu_custom_call.1} parent=1 // pred_fallthru
      _
    // Predicated region
    $region18: #{tpu_custom_call.1} parent=1 // pred_check
      _
    $region19: #{tpu_custom_call.1} parent=1 // pred_check_branch
      %54 = sbr.rel (0) target = $region21
    $region20: #{tpu_custom_call.1} parent=1 // pred_region
      %56 = dma.done [#allocation3], 512
    $region21: #{tpu_custom_call.1} parent=1 // pred_fallthru
      _
    // Predicated region
    $region22: #{tpu_custom_call.1} parent=1 // pred_check
      _
    $region23: #{tpu_custom_call.1} parent=1 // pred_check_branch
      %58 = sbr.rel (0) target = $region25
    $region24: #{tpu_custom_call.1} parent=1 // pred_region
      %60 = dma.done [#allocation6], 512
    $region25: #{tpu_custom_call.1} parent=1 // pred_fallthru
      _
    // Predicated region
    $region26: #{tpu_custom_call.1} parent=1 // pred_check
      _
    $region27: #{tpu_custom_call.1} parent=1 // pred_check_branch
      %62 = sbr.rel (0) target = $region29
    $region28: #{tpu_custom_call.1} parent=1 // pred_region
      %64 = dma.done [#allocation6], 512
    $region29: #{tpu_custom_call.1} parent=1 // pred_fallthru
      _
    %v65 = vld [vmem:[#allocation2] sm:$0xff]
    %v66 = vld [vmem:[#allocation2 + $0x8] sm:$0xff]
    %v67 = vld [vmem:[#allocation2 + $0x10] sm:$0xff]
    %v68 = vld [vmem:[#allocation2 + $0x18] sm:$0xff]
    %v69 = vld [vmem:[#allocation5] sm:$0xff]
    %v70 = vld [vmem:[#allocation5 + $0x8] sm:$0xff]
    %v71 = vld [vmem:[#allocation5 + $0x10] sm:$0xff]
    %v72 = vld [vmem:[#allocation5 + $0x18] sm:$0xff]
    %v73 = vld [vmem:[#allocation7] sm:$0xff]
    %v74 = vld [vmem:[#allocation7 + $0x8] sm:$0xff]
    %v75 = vld [vmem:[#allocation7 + $0x10] sm:$0xff]
    %v76 = vld [vmem:[#allocation7 + $0x18] sm:$0xff]
    %v77 = vmul.f32 %v65, 0.25
    %v78 = vmul.f32 %v66, 0.25
    %v79 = vmul.f32 %v67, 0.25
    %v80 = vmul.f32 %v68, 0.25
    %v81 = vld [vmem:[%s3] sm:$0x3]
    %v82 = vunpack.c.0.s8 %v81
    %v83 = vcvt.s32.f32 %v82
    %vm84 = vcmask 130048
    %v86 = vsel %vm84, %v77, 0
    %v89 = vsel %vm84, %v69, 0
    %91 = vmatpush.xpose.msra.mxu0 0.0
    %92 = vmatpush.xpose.msra.mxu0 0.0
    %93 = vmatpush.xpose.msra.mxu0 0.0
    %94 = vmatpush.xpose.msra.mxu0 0.0
    %95 = vmatpush.xpose.msra.mxu0 0.0
    %96 = vmatpush.xpose.msra.mxu0 0.0
    %97 = vmatpush.xpose.msra.mxu0 0.0
    %98 = vmatpush.xpose.msra.mxu0 0.0
    %99 = vmatpush.xpose.msra.mxu0 0.0
    %100 = vmatpush.xpose.msra.mxu0 0.0
    %101 = vmatpush.xpose.msra.mxu0 0.0
    %102 = vmatpush.xpose.msra.mxu0 0.0
    %103 = vmatpush.xpose.msra.mxu0 0.0
    %104 = vmatpush.xpose.msra.mxu0 0.0
    %105 = vmatpush.xpose.msra.mxu0 0.0
    %106 = vmatpush.xpose.msra.mxu0 %v89
    %107 = vmatmul.f32.gmra.mxu0 %v86
    %v108 = vpop.f32.mrf.mxu0
    %v109 = vadd.f32 %v83, %v108
    %110 = vdwg.mxu0
    %v112 = vsel %vm84, %v78, 0
    %v115 = vsel %vm84, %v70, 0
    %117 = vmatpush.xpose.msra.mxu0 0.0
    %118 = vmatpush.xpose.msra.mxu0 0.0
    %119 = vmatpush.xpose.msra.mxu0 0.0
    %120 = vmatpush.xpose.msra.mxu0 0.0
    %121 = vmatpush.xpose.msra.mxu0 0.0
    %122 = vmatpush.xpose.msra.mxu0 0.0
    %123 = vmatpush.xpose.msra.mxu0 0.0
    %124 = vmatpush.xpose.msra.mxu0 0.0
    %125 = vmatpush.xpose.msra.mxu0 0.0
    %126 = vmatpush.xpose.msra.mxu0 0.0
    %127 = vmatpush.xpose.msra.mxu0 0.0
    %128 = vmatpush.xpose.msra.mxu0 0.0
    %129 = vmatpush.xpose.msra.mxu0 0.0
    %130 = vmatpush.xpose.msra.mxu0 0.0
    %131 = vmatpush.xpose.msra.mxu0 0.0
    %132 = vmatpush.xpose.msra.mxu0 %v115
    %133 = vmatmul.f32.gmra.mxu0 %v112
    %v134 = vpop.f32.mrf.mxu0
    %v135 = vadd.f32 %v83, %v134
    %136 = vdwg.mxu0
    %v138 = vsel %vm84, %v79, 0
    %v141 = vsel %vm84, %v71, 0
    %143 = vmatpush.xpose.msra.mxu0 0.0
    %144 = vmatpush.xpose.msra.mxu0 0.0
    %145 = vmatpush.xpose.msra.mxu0 0.0
    %146 = vmatpush.xpose.msra.mxu0 0.0
    %147 = vmatpush.xpose.msra.mxu0 0.0
    %148 = vmatpush.xpose.msra.mxu0 0.0
    %149 = vmatpush.xpose.msra.mxu0 0.0
    %150 = vmatpush.xpose.msra.mxu0 0.0
    %151 = vmatpush.xpose.msra.mxu0 0.0
    %152 = vmatpush.xpose.msra.mxu0 0.0
    %153 = vmatpush.xpose.msra.mxu0 0.0
    %154 = vmatpush.xpose.msra.mxu0 0.0
    %155 = vmatpush.xpose.msra.mxu0 0.0
    %156 = vmatpush.xpose.msra.mxu0 0.0
    %157 = vmatpush.xpose.msra.mxu0 0.0
    %158 = vmatpush.xpose.msra.mxu0 %v141
    %159 = vmatmul.f32.gmra.mxu0 %v138
    %v160 = vpop.f32.mrf.mxu0
    %v161 = vadd.f32 %v83, %v160
    %162 = vdwg.mxu0
    %v164 = vsel %vm84, %v80, 0
    %v167 = vsel %vm84, %v72, 0
    %169 = vmatpush.xpose.msra.mxu0 0.0
    %170 = vmatpush.xpose.msra.mxu0 0.0
    %171 = vmatpush.xpose.msra.mxu0 0.0
    %172 = vmatpush.xpose.msra.mxu0 0.0
    %173 = vmatpush.xpose.msra.mxu0 0.0
    %174 = vmatpush.xpose.msra.mxu0 0.0
    %175 = vmatpush.xpose.msra.mxu0 0.0
    %176 = vmatpush.xpose.msra.mxu0 0.0
    %177 = vmatpush.xpose.msra.mxu0 0.0
    %178 = vmatpush.xpose.msra.mxu0 0.0
    %179 = vmatpush.xpose.msra.mxu0 0.0
    %180 = vmatpush.xpose.msra.mxu0 0.0
    %181 = vmatpush.xpose.msra.mxu0 0.0
    %182 = vmatpush.xpose.msra.mxu0 0.0
    %183 = vmatpush.xpose.msra.mxu0 0.0
    %184 = vmatpush.xpose.msra.mxu0 %v167
    %185 = vmatmul.f32.gmra.mxu0 %v164
    %v186 = vpop.f32.mrf.mxu0
    %v187 = vadd.f32 %v83, %v186
    %188 = vdwg.mxu0
    %vm189 = vcmask 64512
    %v190 = vsel %vm189, %v109, -inf
    %191 = vmax.xlane.f32.xlu0 %v190
    %v192 = vpop.xlane.xlu0 %191
    %v193 = vsel %vm189, %v135, -inf
    %194 = vmax.xlane.f32.xlu0 %v193
    %v195 = vpop.xlane.xlu0 %194
    %v196 = vsel %vm189, %v161, -inf
    %197 = vmax.xlane.f32.xlu0 %v196
    %v198 = vpop.xlane.xlu0 %197
    %v199 = vsel %vm189, %v187, -inf
    %200 = vmax.xlane.f32.xlu0 %v199
    %v201 = vpop.xlane.xlu0 %200
    %v202 = vsub.f32 %v109, %v192
    %v203 = vsub.f32 %v135, %v195
    %v204 = vsub.f32 %v161, %v198
    %v205 = vsub.f32 %v187, %v201
    %v206 = vmul.f32 %v202, 1.442695
    %v207 = vpow.pop %v206
    %v208 = vmul.f32 %v203, 1.442695
    %v209 = vpow.pop %v208
    %v210 = vmul.f32 %v204, 1.442695
    %v211 = vpow.pop %v210
    %v212 = vmul.f32 %v205, 1.442695
    %v213 = vpow.pop %v212
    %v214 = vsel %vm189, %v207, 0.0
    %215 = vadd.xlane.f32.xlu0 %v214
    %v216 = vpop.xlane.xlu0 %215
    %v217 = vsel %vm189, %v209, 0.0
    %218 = vadd.xlane.f32.xlu0 %v217
    %v219 = vpop.xlane.xlu0 %218
    %v220 = vsel %vm189, %v211, 0.0
    %221 = vadd.xlane.f32.xlu0 %v220
    %v222 = vpop.xlane.xlu0 %221
    %v223 = vsel %vm189, %v213, 0.0
    %224 = vadd.xlane.f32.xlu0 %v223
    %v225 = vpop.xlane.xlu0 %224
    %v226 = vrcp.pop %v216
    %v227 = vrcp.pop %v219
    %v228 = vrcp.pop %v222
    %v229 = vrcp.pop %v225
    %v230 = vmul.f32 %v207, %v226
    %v231 = vmul.f32 %v209, %v227
    %v232 = vmul.f32 %v211, %v228
    %v233 = vmul.f32 %v213, %v229
    %v235 = vsel %vm189, %v230, 0
    %237 = vmatpush.msra.mxu0 0.0
    %238 = vmatpush.msra.mxu0 0.0
    %239 = vmatpush.msra.mxu0 0.0
    %240 = vmatpush.msra.mxu0 0.0
    %241 = vmatpush.msra.mxu0 0.0
    %242 = vmatpush.msra.mxu0 0.0
    %243 = vmatpush.msra.mxu0 0.0
    %244 = vmatpush.msra.mxu0 0.0
    %245 = vmatpush.msra.mxu0 0.0
    %246 = vmatpush.msra.mxu0 0.0
    %247 = vmatpush.msra.mxu0 0.0
    %248 = vmatpush.msra.mxu0 0.0
    %249 = vmatpush.msra.mxu0 0.0
    %250 = vmatpush.msra.mxu0 0.0
    %251 = vmatpush.msra.mxu0 0.0
    %252 = vmatpush.msra.mxu0 %v73
    %253 = vmatmul.f32.gmra.mxu0 %v235
    %v254 = vpop.f32.mrf.mxu0
    %v255 = vadd.f32 0.0, %v254
    %256 = vdwg.mxu0
    %v258 = vsel %vm189, %v231, 0
    %260 = vmatpush.msra.mxu0 0.0
    %261 = vmatpush.msra.mxu0 0.0
    %262 = vmatpush.msra.mxu0 0.0
    %263 = vmatpush.msra.mxu0 0.0
    %264 = vmatpush.msra.mxu0 0.0
    %265 = vmatpush.msra.mxu0 0.0
    %266 = vmatpush.msra.mxu0 0.0
    %267 = vmatpush.msra.mxu0 0.0
    %268 = vmatpush.msra.mxu0 0.0
    %269 = vmatpush.msra.mxu0 0.0
    %270 = vmatpush.msra.mxu0 0.0
    %271 = vmatpush.msra.mxu0 0.0
    %272 = vmatpush.msra.mxu0 0.0
    %273 = vmatpush.msra.mxu0 0.0
    %274 = vmatpush.msra.mxu0 0.0
    %275 = vmatpush.msra.mxu0 %v74
    %276 = vmatmul.f32.gmra.mxu0 %v258
    %v277 = vpop.f32.mrf.mxu0
    %v278 = vadd.f32 0.0, %v277
    %279 = vdwg.mxu0
    %v281 = vsel %vm189, %v232, 0
    %283 = vmatpush.msra.mxu0 0.0
    %284 = vmatpush.msra.mxu0 0.0
    %285 = vmatpush.msra.mxu0 0.0
    %286 = vmatpush.msra.mxu0 0.0
    %287 = vmatpush.msra.mxu0 0.0
    %288 = vmatpush.msra.mxu0 0.0
    %289 = vmatpush.msra.mxu0 0.0
    %290 = vmatpush.msra.mxu0 0.0
    %291 = vmatpush.msra.mxu0 0.0
    %292 = vmatpush.msra.mxu0 0.0
    %293 = vmatpush.msra.mxu0 0.0
    %294 = vmatpush.msra.mxu0 0.0
    %295 = vmatpush.msra.mxu0 0.0
    %296 = vmatpush.msra.mxu0 0.0
    %297 = vmatpush.msra.mxu0 0.0
    %298 = vmatpush.msra.mxu0 %v75
    %299 = vmatmul.f32.gmra.mxu0 %v281
    %v300 = vpop.f32.mrf.mxu0
    %v301 = vadd.f32 0.0, %v300
    %302 = vdwg.mxu0
    %v304 = vsel %vm189, %v233, 0
    %306 = vmatpush.msra.mxu0 0.0
    %307 = vmatpush.msra.mxu0 0.0
    %308 = vmatpush.msra.mxu0 0.0
    %309 = vmatpush.msra.mxu0 0.0
    %310 = vmatpush.msra.mxu0 0.0
    %311 = vmatpush.msra.mxu0 0.0
    %312 = vmatpush.msra.mxu0 0.0
    %313 = vmatpush.msra.mxu0 0.0
    %314 = vmatpush.msra.mxu0 0.0
    %315 = vmatpush.msra.mxu0 0.0
    %316 = vmatpush.msra.mxu0 0.0
    %317 = vmatpush.msra.mxu0 0.0
    %318 = vmatpush.msra.mxu0 0.0
    %319 = vmatpush.msra.mxu0 0.0
    %320 = vmatpush.msra.mxu0 0.0
    %321 = vmatpush.msra.mxu0 %v76
    %322 = vmatmul.f32.gmra.mxu0 %v304
    %v323 = vpop.f32.mrf.mxu0
    %v324 = vadd.f32 0.0, %v323
    %325 = vdwg.mxu0
    %326 = vst.msk [vmem:[#allocation8] sm:$0xff] %vm84, %v255
    %327 = vst.msk [vmem:[#allocation8 + $0x8] sm:$0xff] %vm84, %v278
    %328 = vst.msk [vmem:[#allocation8 + $0x10] sm:$0xff] %vm84, %v301
    %329 = vst.msk [vmem:[#allocation8 + $0x18] sm:$0xff] %vm84, %v324
    // Predicated region
    $region30: #{tpu_custom_call.1} parent=1 // pred_check
      _
    $region31: #{tpu_custom_call.1} parent=1 // pred_check_branch
      %331 = sbr.rel (0) target = $region33
    $region32: #{tpu_custom_call.1} parent=1 // pred_region
      %333 = vsyncadd [#allocation4], 0
      %s334 = sshll.u32 [#allocation8], 4
      %s335 = int_to_ptr.vmem [resolvable:$true] %s334
      %s336 = sshll.u32 %s4, 4
      %s337 = int_to_ptr.hbm [resolvable:$true] %s336
      %342 = dma.vmem_to_hbm [thread:$0]  %s335, 512, %s337, [#allocation4], 128, 128, 8
    $region33: #{tpu_custom_call.1} parent=1 // pred_fallthru
      _
    // Predicated region
    $region34: #{tpu_custom_call.1} parent=1 // pred_check
      _
    $region35: #{tpu_custom_call.1} parent=1 // pred_check_branch
      %344 = sbr.rel (0) target = $region37
    $region36: #{tpu_custom_call.1} parent=1 // pred_region
      %346 = dma.done [#allocation4], 512
    $region37: #{tpu_custom_call.1} parent=1 // pred_fallthru
      _
    %347 = vsyncpa [#allocation3], 1
    %348 = vsyncpa [#allocation6], 1
    %349 = vsyncpa [#allocation4], 1

</llo_original>
